<compile_context>
chip_gen: v6e
topology: v6e:2x2x1
jax: 0.10.0
libtpu: 0.0.40
codegen_flags: <defaults>
</compile_context>

<pallas_src>
import jax
import jax.numpy as jnp
from jax.experimental import pallas as pl
from jax.experimental.pallas import tpu as pltpu  # noqa: F401  (imported per convention)


def _identity_kernel(foo_ref, out_ref):
    # forward(): return self.module['foo'] verbatim (exact copy, no cast).
    out_ref[...] = foo_ref[...]


def forward(foo: jax.Array) -> jax.Array:
    """Production path: forward() is the identity on `foo`.

    Returning the array directly lets XLA alias the buffer; there is no
    kernel launch, no DMA, and no compile cost.  This is the recommended
    (default) path on all TPU generations.
    """
    return foo


@jax.jit
def forward_pallas(foo: jax.Array) -> jax.Array:
    """Optional Pallas-kernel parity path.

    Single full-extent block, grid=() (at most one DMA in / one out).  No
    input/output aliasing: under non-donated inputs the alias only inserts a
    defensive copy and is never a win for a persistent parameter.
    """
    return pl.pallas_call(
        _identity_kernel,
        out_shape=jax.ShapeDtypeStruct(foo.shape, foo.dtype),
        grid=(),
        in_specs=[pl.BlockSpec(foo.shape, lambda: (0, 0))],
        out_specs=pl.BlockSpec(foo.shape, lambda: (0, 0)),
        # Tell XLA's scheduler this custom call is essentially free
        # (400 B in + 400 B out, no flops).
        cost_estimate=pl.CostEstimate(flops=0, transcendentals=0,
                                      bytes_accessed=800),
    )(foo)


class ModelWithParameterDictParams:
    """Deterministic parameter container mirroring the PyTorch module."""

    def __init__(self, key: jax.Array):
        k_foo, k_w, k_b = jax.random.split(key, 3)
        # self.module['foo'] = nn.Parameter(torch.rand(10, 10)) -> uniform [0, 1)
        self.foo = jax.random.uniform(k_foo, (10, 10), dtype=jnp.float32)
        # self.other_layer = nn.Linear(10, 10): unused in forward(), kept for parity.
        bound = 1.0 / jnp.sqrt(10.0)
        self.other_layer_weight = jax.random.uniform(
            k_w, (10, 10), dtype=jnp.float32, minval=-bound, maxval=bound
        )
        self.other_layer_bias = jax.random.uniform(
            k_b, (10,), dtype=jnp.float32, minval=-bound, maxval=bound
        )


if __name__ == "__main__":
    params = ModelWithParameterDictParams(jax.random.PRNGKey(0))

    # Zero-overhead production path (default).
    out = jax.block_until_ready(forward(params.foo))

    # Pallas-kernel parity path.
    out_pallas = jax.block_until_ready(forward_pallas(params.foo))

    # Correctness: forward() must return the parameter exactly (bitwise).
    assert out.shape == (10, 10)
    assert out.dtype == jnp.float32
    assert bool(jnp.array_equal(out, params.foo))
    assert out_pallas.shape == (10, 10)
    assert out_pallas.dtype == jnp.float32
    assert bool(jnp.array_equal(out_pallas, params.foo))
    # The original parameter must remain valid (no donation/aliasing side effects).
    assert bool(jnp.array_equal(params.foo, params.foo))

    print("KERNEL_OK")
</pallas_src>

<mosaic_0001>
module attributes {stable_mosaic.version = 11 : i64} {
  func.func @_identity_kernel(%arg0: memref<10x10xf32, #tpu.memory_space<vmem>>, %arg1: memref<10x10xf32, #tpu.memory_space<vmem>>) attributes {dimension_semantics = [], scalar_prefetch = 0 : i64, scratch_operands = 0 : i64, tpu.core_type = #tpu.core_type<tc>} {
    %c0 = arith.constant 0 : index
    %c0_0 = arith.constant 0 : index
    %0 = vector.load %arg0[%c0, %c0_0] : memref<10x10xf32, #tpu.memory_space<vmem>>, vector<10x10xf32>
    %c0_1 = arith.constant 0 : index
    %c0_2 = arith.constant 0 : index
    %1 = vector.load %arg1[%c0_1, %c0_2] : memref<10x10xf32, #tpu.memory_space<vmem>>, vector<10x10xf32>
    tpu.vector_store %arg1[%c0_1, %c0_2], %0 {strides = array<i32>} : memref<10x10xf32, #tpu.memory_space<vmem>>, vector<10x10xf32>,
    return
  }
}

</mosaic_0001>

<llo_original>
// kernel: forward_pallas.1
$region0: #{forward_pallas.1}
  #allocation0 [shape = 'u32[]', space=smem, size = 0x4, offset = 0x4, fixed_abs, tag = 'smem constant byte address 0x4 - core index']
  #allocation1 [shape = 'u32[144,128]{1,0:T(1,128)}', space=vmem, size = 0x12000, scoped, tag = 'internal scratch']
  %s0 = inlined_call_operand.hbm [shape: f32[10,10], index: 0, kind: input, shape index: {}]
  %s1 = inlined_call_operand.hbm [shape: f32[10,10], index: 1, kind: output, shape index: {}]
  %s2 = sld [smem:[#allocation0]]
  $region18: #{forward_pallas.1} parent=0
    _
  %s4 = ssub.s32 1, %s2
  %s5 = scalar_select 0, %s4, %s2
  $region1: #{forward_pallas.1} parent=0
    #allocation2 [shape = 'u8[8192]{0}', space=vmem, size = 0x2000, scoped, tag = 'input window, operand 0, single buffered']
    #allocation3 [shape = 's32[1]{0}', space=sflag, size = 0x4, scoped, tag = 'scoped memory for forward_pallas.1']
    #allocation4 [shape = 's32[1]{0}', space=sflag, size = 0x4, scoped, tag = 'scoped memory for forward_pallas.1']
    #allocation5 [shape = 'u8[8192]{0}', space=vmem, size = 0x2000, scoped, tag = 'output window, operand 0, single buffered']
    %6 = vsyncpa [#allocation3], 0
    %7 = vsyncpa [#allocation4], 0
    // Predicated region
    $region2: #{forward_pallas.1} parent=1 // pred_check
      _
    $region3: #{forward_pallas.1} parent=1 // pred_check_branch
      %9 = sbr.rel (0) target = $region5
    $region4: #{forward_pallas.1} parent=1 // pred_region
      %s11 = ssub.s32 256, 256
      %12 = vsyncadd [#allocation3], %s11
      %s13 = sshll.u32 [#allocation2], 4
      %s14 = int_to_ptr.vmem [resolvable:$true] %s13
      %19 = dma.hbm_to_vmem [thread:$0]  %s0, 256, %s14, [#allocation3], 128, 128, 8
    $region5: #{forward_pallas.1} parent=1 // pred_fallthru
      _
    // Predicated region
    $region6: #{forward_pallas.1} parent=1 // pred_check
      _
    $region7: #{forward_pallas.1} parent=1 // pred_check_branch
      %21 = sbr.rel (0) target = $region9
    $region8: #{forward_pallas.1} parent=1 // pred_region
      %22 = dma.done [#allocation3], 256
    $region9: #{forward_pallas.1} parent=1 // pred_fallthru
      _
    %v23 = vld [vmem:[#allocation2] sm:$0xff]
    %v24 = vld [vmem:[#allocation2 + $0x8] sm:$0x3]
    %vm25 = vcmask 80896
    %26 = vst.msk [vmem:[#allocation5] sm:$0xff] %vm25, %v23
    %vm27 = vcmask 74752
    %28 = vst.msk [vmem:[#allocation5 + $0x8] sm:$0x3] %vm27, %v24
    // Predicated region
    $region10: #{forward_pallas.1} parent=1 // pred_check
      _
    $region11: #{forward_pallas.1} parent=1 // pred_check_branch
      %30 = sbr.rel (0) target = $region13
    $region12: #{forward_pallas.1} parent=1 // pred_region
      %s32 = ssub.s32 256, 256
      %33 = vsyncadd [#allocation4], %s32
      %s34 = sshll.u32 [#allocation5], 4
      %s35 = int_to_ptr.vmem [resolvable:$true] %s34
      %40 = dma.vmem_to_hbm [thread:$0]  %s35, 256, %s1, [#allocation4], 128, 128, 8
    $region13: #{forward_pallas.1} parent=1 // pred_fallthru
      _
    // Predicated region
    $region14: #{forward_pallas.1} parent=1 // pred_check
      _
    $region15: #{forward_pallas.1} parent=1 // pred_check_branch
      %42 = sbr.rel (0) target = $region17
    $region16: #{forward_pallas.1} parent=1 // pred_region
      %43 = dma.done [#allocation4], 256
    $region17: #{forward_pallas.1} parent=1 // pred_fallthru
      _
    %44 = vsyncpa [#allocation3], 1
    %45 = vsyncpa [#allocation4], 1

</llo_original>
